<compile_context>
chip_gen: v6e
topology: v6e:2x2x1
jax: 0.10.0
libtpu: 0.0.40
codegen_flags: <defaults>
</compile_context>

<pallas_src>
import functools

import jax
import jax.numpy as jnp
from jax import lax
from jax.experimental import pallas as pl
from jax.experimental.pallas import tpu as pltpu


def group_norm_kernel(x_ref, gamma_ref, beta_ref, o_ref, *, eps):
    """Fused GroupNorm for one batch element.

    x_ref/o_ref: (1, G, Cg, HW); gamma_ref/beta_ref: (G, Cg, 1).
    Group statistics are computed over (Cg, HW) in f32, then the per-channel
    affine is applied, all in one pass with no HBM intermediates.
    """
    x = x_ref[0].astype(jnp.float32)                                   # (G, Cg, HW)

    # Mean over (Cg, HW): lane reduce then sublane reduce (exact: uniform sizes).
    mean = jnp.mean(jnp.mean(x, axis=2, keepdims=True), axis=1, keepdims=True)
    centered = x - mean                                                # (G, Cg, HW)
    sq = centered * centered
    var = jnp.mean(jnp.mean(sq, axis=2, keepdims=True), axis=1, keepdims=True)
    inv = lax.rsqrt(var + eps)                                         # EUP, cheap

    g = gamma_ref[...].astype(jnp.float32)                             # (G, Cg, 1)
    b = beta_ref[...].astype(jnp.float32)
    o_ref[0] = (centered * inv * g + b).astype(o_ref.dtype)


def group_norm(x_nchw, gamma, beta, num_groups, eps=1e-5):
    """Equivalent of F.group_norm(x, num_groups, gamma, beta, eps) on NCHW."""
    N, C, H, W = x_nchw.shape
    assert C % num_groups == 0, (C, num_groups)
    G, Cg, HW = num_groups, C // num_groups, H * W

    x4 = x_nchw.reshape(N, G, Cg, HW)            # free reshape, keeps NCHW order
    gamma3 = gamma.reshape(G, Cg, 1)
    beta3 = beta.reshape(G, Cg, 1)

    out = pl.pallas_call(
        functools.partial(group_norm_kernel, eps=eps),
        out_shape=jax.ShapeDtypeStruct((N, G, Cg, HW), x_nchw.dtype),
        grid_spec=pltpu.PrefetchScalarGridSpec(
            num_scalar_prefetch=0,
            grid=(N,),
            in_specs=[
                # Block last-two dims equal the full array dims -> valid for any
                # H*W / Cg (no divisibility constraint, no M % tm assert).
                pl.BlockSpec((1, G, Cg, HW), lambda n: (n, 0, 0, 0)),
                pl.BlockSpec((G, Cg, 1), lambda n: (0, 0, 0)),
                pl.BlockSpec((G, Cg, 1), lambda n: (0, 0, 0)),
            ],
            out_specs=pl.BlockSpec((1, G, Cg, HW), lambda n: (n, 0, 0, 0)),
        ),
        compiler_params=pltpu.CompilerParams(
            # Batch axis is independent -> shard across TensorCores on v7x.
            dimension_semantics=("parallel",),
        ),
    )(x4, gamma3, beta3)
    return out.reshape(N, C, H, W)


# ----------------------------- pure-JAX reference -----------------------------

def group_norm_reference(x, gamma, beta, num_groups, eps=1e-5):
    N, C, H, W = x.shape
    xg = x.reshape(N, num_groups, -1).astype(jnp.float32)
    mean = xg.mean(axis=-1, keepdims=True)
    var = jnp.mean(jnp.square(xg - mean), axis=-1, keepdims=True)
    xn = ((xg - mean) / jnp.sqrt(var + eps)).reshape(N, C, H, W)
    return xn * gamma[None, :, None, None] + beta[None, :, None, None]


if __name__ == "__main__":
    key = jax.random.PRNGKey(0)
    kx, kg, kb = jax.random.split(key, 3)

    # GroupNorm(num_groups=2, num_channels=4) on a (2, 4, 16, 16) NCHW input.
    N, C, H, W = 2, 4, 16, 16
    num_groups = 2

    x = jax.random.normal(kx, (N, C, H, W), dtype=jnp.float32)
    # nn.GroupNorm default init is weight=1, bias=0; perturb slightly so the
    # affine path is actually exercised (forward semantics are identical).
    gamma = 1.0 + 0.1 * jax.random.normal(kg, (C,), dtype=jnp.float32)
    beta = 0.1 * jax.random.normal(kb, (C,), dtype=jnp.float32)

    out = group_norm(x, gamma, beta, num_groups)
    out = jax.block_until_ready(out)

    ref = group_norm_reference(x, gamma, beta, num_groups)
    assert out.shape == (N, C, H, W), out.shape
    max_err = float(jnp.max(jnp.abs(out - ref)))
    assert max_err < 1e-4, f"mismatch vs reference: {max_err}"

    print("KERNEL_OK")
</pallas_src>

<mosaic_0001>
module attributes {stable_mosaic.version = 11 : i64} {
  func.func @group_norm_kernel(%arg0: i32, %arg1: memref<1x2x2x256xf32, #tpu.memory_space<vmem>>, %arg2: memref<2x2x1xf32, #tpu.memory_space<vmem>>, %arg3: memref<2x2x1xf32, #tpu.memory_space<vmem>>, %arg4: memref<1x2x2x256xf32, #tpu.memory_space<vmem>>) attributes {dimension_semantics = [#tpu.dimension_semantics<parallel>], iteration_bounds = array<i64: 2>, scalar_prefetch = 0 : i64, scratch_operands = 0 : i64, tpu.core_type = #tpu.core_type<tc>, window_params = [{transform_indices = @transform_0, window_bounds = array<i64: 1, 2, 2, 256>}, {pipeline_mode = #tpu.pipeline_mode<synchronous>, transform_indices = @transform_1, window_bounds = array<i64: 2, 2, 1>}, {pipeline_mode = #tpu.pipeline_mode<synchronous>, transform_indices = @transform_2, window_bounds = array<i64: 2, 2, 1>}, {transform_indices = @transform_3, window_bounds = array<i64: 1, 2, 2, 256>}]} {
    %c0 = arith.constant 0 : index
    %c0_0 = arith.constant 0 : index
    %c0_1 = arith.constant 0 : index
    %c0_2 = arith.constant 0 : index
    %0 = vector.load %arg1[%c0, %c0_0, %c0_1, %c0_2] : memref<1x2x2x256xf32, #tpu.memory_space<vmem>>, vector<1x2x2x256xf32>
    %1 = vector.shape_cast %0 : vector<1x2x2x256xf32> to vector<2x2x256xf32>
    %cst = arith.constant dense<0.000000e+00> : vector<2x2xf32>
    %2 = vector.multi_reduction <add>, %1, %cst [2] : vector<2x2x256xf32> to vector<2x2xf32>
    %3 = vector.shape_cast %2 : vector<2x2xf32> to vector<2x2x1xf32>
    %cst_3 = arith.constant 2.560000e+02 : f32
    %4 = vector.broadcast %cst_3 : f32 to vector<2x2x1xf32>
    %5 = arith.divf %3, %4 : vector<2x2x1xf32>
    %cst_4 = arith.constant dense<0.000000e+00> : vector<2x1xf32>
    %6 = vector.multi_reduction <add>, %5, %cst_4 [1] : vector<2x2x1xf32> to vector<2x1xf32>
    %7 = vector.shape_cast %6 : vector<2x1xf32> to vector<2x1x1xf32>
    %cst_5 = arith.constant 2.000000e+00 : f32
    %8 = vector.broadcast %cst_5 : f32 to vector<2x1x1xf32>
    %9 = arith.divf %7, %8 : vector<2x1x1xf32>
    %10 = vector.broadcast %9 : vector<2x1x1xf32> to vector<2x2x256xf32>
    %11 = arith.subf %1, %10 : vector<2x2x256xf32>
    %12 = arith.mulf %11, %11 : vector<2x2x256xf32>
    %cst_6 = arith.constant dense<0.000000e+00> : vector<2x2xf32>
    %13 = vector.multi_reduction <add>, %12, %cst_6 [2] : vector<2x2x256xf32> to vector<2x2xf32>
    %14 = vector.shape_cast %13 : vector<2x2xf32> to vector<2x2x1xf32>
    %cst_7 = arith.constant 2.560000e+02 : f32
    %15 = vector.broadcast %cst_7 : f32 to vector<2x2x1xf32>
    %16 = arith.divf %14, %15 : vector<2x2x1xf32>
    %cst_8 = arith.constant dense<0.000000e+00> : vector<2x1xf32>
    %17 = vector.multi_reduction <add>, %16, %cst_8 [1] : vector<2x2x1xf32> to vector<2x1xf32>
    %18 = vector.shape_cast %17 : vector<2x1xf32> to vector<2x1x1xf32>
    %cst_9 = arith.constant 2.000000e+00 : f32
    %19 = vector.broadcast %cst_9 : f32 to vector<2x1x1xf32>
    %20 = arith.divf %18, %19 : vector<2x1x1xf32>
    %cst_10 = arith.constant 9.99999974E-6 : f32
    %21 = vector.broadcast %cst_10 : f32 to vector<2x1x1xf32>
    %22 = arith.addf %20, %21 : vector<2x1x1xf32>
    %23 = math.rsqrt %22 : vector<2x1x1xf32>
    %c0_11 = arith.constant 0 : index
    %c0_12 = arith.constant 0 : index
    %c0_13 = arith.constant 0 : index
    %24 = vector.load %arg2[%c0_11, %c0_12, %c0_13] : memref<2x2x1xf32, #tpu.memory_space<vmem>>, vector<2x2x1xf32>
    %c0_14 = arith.constant 0 : index
    %c0_15 = arith.constant 0 : index
    %c0_16 = arith.constant 0 : index
    %25 = vector.load %arg3[%c0_14, %c0_15, %c0_16] : memref<2x2x1xf32, #tpu.memory_space<vmem>>, vector<2x2x1xf32>
    %26 = vector.broadcast %23 : vector<2x1x1xf32> to vector<2x2x256xf32>
    %27 = arith.mulf %11, %26 : vector<2x2x256xf32>
    %28 = vector.broadcast %24 : vector<2x2x1xf32> to vector<2x2x256xf32>
    %29 = arith.mulf %27, %28 : vector<2x2x256xf32>
    %30 = vector.broadcast %25 : vector<2x2x1xf32> to vector<2x2x256xf32>
    %31 = arith.addf %29, %30 : vector<2x2x256xf32>
    %c0_17 = arith.constant 0 : index
    %c0_18 = arith.constant 0 : index
    %c0_19 = arith.constant 0 : index
    %c0_20 = arith.constant 0 : index
    %32 = vector.load %arg4[%c0_17, %c0_18, %c0_19, %c0_20] : memref<1x2x2x256xf32, #tpu.memory_space<vmem>>, vector<1x2x2x256xf32>
    %33 = vector.shape_cast %32 : vector<1x2x2x256xf32> to vector<2x2x256xf32>
    %34 = vector.shape_cast %31 : vector<2x2x256xf32> to vector<1x2x2x256xf32>
    tpu.vector_store %arg4[%c0_17, %c0_18, %c0_19, %c0_20], %34 {strides = array<i32>} : memref<1x2x2x256xf32, #tpu.memory_space<vmem>>, vector<1x2x2x256xf32>,
    return
  }
  func.func @transform_0(%arg0: i32) -> (i32, i32, i32, i32) {
    %c0_i32 = arith.constant 0 : i32
    %c0_i32_0 = arith.constant 0 : i32
    %c0_i32_1 = arith.constant 0 : i32
    %c0_i32_2 = arith.constant 0 : i32
    return %arg0, %c0_i32, %c0_i32_0, %c0_i32_1 : i32, i32, i32, i32
  }
  func.func @transform_1(%arg0: i32) -> (i32, i32, i32) {
    %c0_i32 = arith.constant 0 : i32
    %c0_i32_0 = arith.constant 0 : i32
    %c0_i32_1 = arith.constant 0 : i32
    %c0_i32_2 = arith.constant 0 : i32
    return %c0_i32, %c0_i32_0, %c0_i32_1 : i32, i32, i32
  }
  func.func @transform_2(%arg0: i32) -> (i32, i32, i32) {
    %c0_i32 = arith.constant 0 : i32
    %c0_i32_0 = arith.constant 0 : i32
    %c0_i32_1 = arith.constant 0 : i32
    %c0_i32_2 = arith.constant 0 : i32
    return %c0_i32, %c0_i32_0, %c0_i32_1 : i32, i32, i32
  }
  func.func @transform_3(%arg0: i32) -> (i32, i32, i32, i32) {
    %c0_i32 = arith.constant 0 : i32
    %c0_i32_0 = arith.constant 0 : i32
    %c0_i32_1 = arith.constant 0 : i32
    %c0_i32_2 = arith.constant 0 : i32
    return %arg0, %c0_i32, %c0_i32_0, %c0_i32_1 : i32, i32, i32, i32
  }
}

</mosaic_0001>

<llo_original>
// kernel: tpu_custom_call.1
$region0: #{tpu_custom_call.1}
  #allocation0 [shape = 'u32[]', space=smem, size = 0x4, offset = 0x4, fixed_abs, tag = 'smem constant byte address 0x4 - core index']
  #allocation1 [shape = 'u32[144,128]{1,0:T(1,128)}', space=vmem, size = 0x12000, scoped, tag = 'internal scratch']
  %s0 = inlined_call_operand.hbm [shape: f32[2,2,2,256], index: 0, kind: input, shape index: {}]
  %s1 = inlined_call_operand.vmem [shape: f32[2,2,1], index: 1, kind: input, shape index: {}]
  %s2 = inlined_call_operand.vmem [shape: f32[2,2,1], index: 2, kind: input, shape index: {}]
  %s3 = inlined_call_operand.hbm [shape: f32[2,2,2,256], index: 3, kind: output, shape index: {}]
  %s4 = sld [smem:[#allocation0]]
  $region49: #{tpu_custom_call.1} parent=0
    _
  %s6 = ssub.s32 1, %s4
  %s7 = scalar_select 0, %s6, %s4
  $region1: #{tpu_custom_call.1} parent=0
    #allocation2 [shape = 'u8[8192]{0}', space=vmem, size = 0x2000, scoped, tag = 'input window, operand 0']
    #allocation3 [shape = 's32[2]{0}', space=sflag, size = 0x8, scoped, tag = 'scoped memory for tpu_custom_call.1']
    #allocation4 [shape = 's32[2]{0}', space=sflag, size = 0x8, scoped, tag = 'scoped memory for tpu_custom_call.1']
    #allocation5 [shape = 'u8[8192]{0}', space=vmem, size = 0x2000, scoped, tag = 'output window, operand 0']
    %8 = vsyncpa [#allocation3], 0
    %s9 = scalar_lea.sflag [#allocation3], 1
    %10 = vsyncpa %s9, 0
    %11 = vsyncpa [#allocation4], 0
    %s12 = scalar_lea.sflag [#allocation4], 1
    %13 = vsyncpa %s12, 0
    loop: start=0, step=1, limit=4
    $region2: #{tpu_custom_call.1} parent=1 // loop_pre_header
      _
    $region3: #{tpu_custom_call.1} parent=1 // loop_header
      %s15 = sphi 0, %s19
      %p16 = scmp.ge.s32.totalorder %s15, 4
      %s25 = sphi 0, %s27
      %s28 = sphi 0, %s25
      %s29 = sphi 0, %s28
      %s45 = sphi 0, %s29
      %s49 = sphi 0, %s49
      %s51 = sphi 0, %s49
      %s52 = sphi 0, %s51
      %s66 = sphi 0, %s52
      %s70 = sphi 0, %s70
      %s72 = sphi 0, %s70
      %s73 = sphi 0, %s72
      %s87 = sphi 0, %s73
      %s93 = sphi 0, %s95
      %s96 = sphi 0, %s93
      %s97 = sphi 0, %s96
      %s113 = sphi 0, %s97
    $region4: #{tpu_custom_call.1} parent=1 // loop_header_branch
      %18 = sbr.rel (%p16) target = $region8
    $region5: #{tpu_custom_call.1} parent=1 // loop_body
      %s20 = ssub.s32 %s15, 1
      %s21 = ssub.s32 %s15, 2
      %s22 = sadd.s32 %s15, 1
      %s23 = ssub.s32 %s15, %s22
      %p24 = scmp.eq.s32.totalorder %s23, 0
      %s26 = sadd.s32 %s25, 1
      %s27 = scalar_select %p24, %s25, %s26
      %p30 = pneg %p24
      %p31 = scmp.eq.s32.totalorder %s15, 1
      %p32 = por %p30, %p31
      %p33 = scmp.ne.s32.totalorder %s25, %s28
      %p34 = scmp.eq.s32.totalorder %s15, 0
      %p35 = por %p33, %p34
      %p36 = scmp.ne.s32.totalorder %s25, %s28
      %p37 = scmp.eq.s32.totalorder %s20, 1
      %p38 = por %p36, %p37
      %p39 = scmp.ne.s32.totalorder %s28, %s29
      %p40 = scmp.eq.s32.totalorder %s20, 0
      %p41 = por %p39, %p40
      %p42 = scmp.ne.s32.totalorder %s28, %s29
      %p43 = scmp.eq.s32.totalorder %s21, 1
      %p44 = por %p42, %p43
      %p46 = scmp.ne.s32.totalorder %s29, %s45
      %p47 = scmp.eq.s32.totalorder %s21, 0
      %p48 = por %p46, %p47
      %s50 = sadd.s32 %s49, 1
      %p53 = scmp.eq.s32.totalorder %s15, 1
      %p54 = scmp.ne.s32.totalorder %s49, %s51
      %p55 = scmp.eq.s32.totalorder %s15, 0
      %p56 = por %p54, %p55
      %p57 = scmp.ne.s32.totalorder %s49, %s51
      %p58 = scmp.eq.s32.totalorder %s20, 1
      %p59 = por %p57, %p58
      %p60 = scmp.ne.s32.totalorder %s51, %s52
      %p61 = scmp.eq.s32.totalorder %s20, 0
      %p62 = por %p60, %p61
      %p63 = scmp.ne.s32.totalorder %s51, %s52
      %p64 = scmp.eq.s32.totalorder %s21, 1
      %p65 = por %p63, %p64
      %p67 = scmp.ne.s32.totalorder %s52, %s66
      %p68 = scmp.eq.s32.totalorder %s21, 0
      %p69 = por %p67, %p68
      %s71 = sadd.s32 %s70, 1
      %p74 = scmp.eq.s32.totalorder %s15, 1
      %p75 = scmp.ne.s32.totalorder %s70, %s72
      %p76 = scmp.eq.s32.totalorder %s15, 0
      %p77 = por %p75, %p76
      %p78 = scmp.ne.s32.totalorder %s70, %s72
      %p79 = scmp.eq.s32.totalorder %s20, 1
      %p80 = por %p78, %p79
      %p81 = scmp.ne.s32.totalorder %s72, %s73
      %p82 = scmp.eq.s32.totalorder %s20, 0
      %p83 = por %p81, %p82
      %p84 = scmp.ne.s32.totalorder %s72, %s73
      %p85 = scmp.eq.s32.totalorder %s21, 1
      %p86 = por %p84, %p85
      %p88 = scmp.ne.s32.totalorder %s73, %s87
      %p89 = scmp.eq.s32.totalorder %s21, 0
      %p90 = por %p88, %p89
      %s91 = ssub.s32 %s15, %s22
      %p92 = scmp.eq.s32.totalorder %s91, 0
      %s94 = sadd.s32 %s93, 1
      %s95 = scalar_select %p92, %s93, %s94
      %p98 = pneg %p92
      %p99 = scmp.eq.s32.totalorder %s15, 1
      %p100 = por %p98, %p99
      %p101 = scmp.ne.s32.totalorder %s93, %s96
      %p102 = scmp.eq.s32.totalorder %s15, 0
      %p103 = por %p101, %p102
      %p104 = scmp.ne.s32.totalorder %s93, %s96
      %p105 = scmp.eq.s32.totalorder %s20, 1
      %p106 = por %p104, %p105
      %p107 = scmp.ne.s32.totalorder %s96, %s97
      %p108 = scmp.eq.s32.totalorder %s20, 0
      %p109 = por %p107, %p108
      %p110 = scmp.ne.s32.totalorder %s96, %s97
      %p111 = scmp.eq.s32.totalorder %s21, 1
      %p112 = por %p110, %p111
      %p114 = scmp.ne.s32.totalorder %s97, %s113
      %p115 = scmp.eq.s32.totalorder %s21, 0
      %p116 = por %p114, %p115
      %p117 = scmp.le.s32.totalorder 1, %s15
      %p118 = scmp.lt.s32.totalorder %s15, 3
      %p119 = pnand %p117, %p118
      %p120 = pneg %p119
      // Predicated region
      $region9: #{tpu_custom_call.1} parent=5 // pred_check
        _
      $region10: #{tpu_custom_call.1} parent=5 // pred_check_branch
        %122 = sbr.rel (%p119) target = $region12
      $region11: #{tpu_custom_call.1} parent=5 // pred_region
        %s123 = ssub.s32 %s15, 1
        // Predicated region
        $region13: #{tpu_custom_call.1} parent=11 // pred_check
          %p124 = pneg %p62
        $region14: #{tpu_custom_call.1} parent=11 // pred_check_branch
          %126 = sbr.rel (%p124) target = $region16
        $region15: #{tpu_custom_call.1} parent=11 // pred_region
          _
        $region16: #{tpu_custom_call.1} parent=11 // pred_fallthru
          _
        // Predicated region
        $region17: #{tpu_custom_call.1} parent=11 // pred_check
          %p127 = pneg %p83
        $region18: #{tpu_custom_call.1} parent=11 // pred_check_branch
          %129 = sbr.rel (%p127) target = $region20
        $region19: #{tpu_custom_call.1} parent=11 // pred_region
          _
        $region20: #{tpu_custom_call.1} parent=11 // pred_fallthru
          _
      $region12: #{tpu_custom_call.1} parent=5 // pred_fallthru
        _
      %p130 = scmp.lt.s32.totalorder %s15, 2
      // Predicated region
      $region21: #{tpu_custom_call.1} parent=5 // pred_check
        %p131 = pneg %p130
      $region22: #{tpu_custom_call.1} parent=5 // pred_check_branch
        %133 = sbr.rel (%p131) target = $region24
      $region23: #{tpu_custom_call.1} parent=5 // pred_region
        // Predicated region
        $region25: #{tpu_custom_call.1} parent=23 // pred_check
          %p134 = pneg %p35
        $region26: #{tpu_custom_call.1} parent=23 // pred_check_branch
          %136 = sbr.rel (%p134) target = $region28
        $region27: #{tpu_custom_call.1} parent=23 // pred_region
          %s137 = sand.u32 %s25, 1
          %s138 = scalar_lea.sflag [#allocation3], %s137
          %s139 = sand.u32 %s25, 1
          %s140 = smul.addr %s139, 8
          %s141 = scalar_lea.vmem [#allocation2], %s140
          %s143 = ssub.s32 128, 128
          %144 = vsyncadd %s138, %s143
          %s145 = smul.addr %s15, 4
          %s146 = smul.addr %s145, 32
          %s147 = scalar_lea.hbm %s0, %s146
          %s148 = sshll.u32 %s141, 4
          %s149 = int_to_ptr.vmem [resolvable:$true] %s148
          %154 = dma.hbm_to_vmem [thread:$0]  %s147, 128, %s149, %s138, 64, 64, 4
        $region28: #{tpu_custom_call.1} parent=23 // pred_fallthru
          _
      $region24: #{tpu_custom_call.1} parent=5 // pred_fallthru
        _
      %p155 = scmp.le.s32.totalorder 1, %s15
      %p156 = scmp.lt.s32.totalorder %s15, 3
      %p157 = pnand %p155, %p156
      %p158 = pneg %p157
      // Predicated region
      $region29: #{tpu_custom_call.1} parent=5 // pred_check
        _
      $region30: #{tpu_custom_call.1} parent=5 // pred_check_branch
        %160 = sbr.rel (%p157) target = $region32
      $region31: #{tpu_custom_call.1} parent=5 // pred_region
        %s161 = ssub.s32 %s15, 1
        %s162 = sand.u32 %s28, 1
        %s163 = scalar_lea.sflag [#allocation3], %s162
        %s164 = sand.u32 %s28, 1
        %s165 = smul.addr %s164, 8
        %s166 = scalar_lea.vmem [#allocation2], %s165
        // Predicated region
        $region33: #{tpu_custom_call.1} parent=31 // pred_check
          %p167 = pneg %p41
        $region34: #{tpu_custom_call.1} parent=31 // pred_check_branch
          %169 = sbr.rel (%p167) target = $region36
        $region35: #{tpu_custom_call.1} parent=31 // pred_region
          %170 = dma.done %s163, 128
        $region36: #{tpu_custom_call.1} parent=31 // pred_fallthru
          _
        %s171 = sand.u32 %s28, 1
        %s172 = scalar_lea.sflag [#allocation3], %s171
        %s173 = sand.u32 %s28, 1
        %s174 = smul.addr %s173, 8
        %s175 = scalar_lea.vmem [#allocation2], %s174
        %p176 = pneg %p41
        %p177 = pneg %p38
        %p178 = pneg %p62
        %p179 = pneg %p59
        %p180 = pneg %p83
        %p181 = pneg %p80
        %p182 = pneg %p109
        %p183 = pneg %p106
        %s184 = sand.u32 %s96, 1
        %s185 = scalar_lea.sflag [#allocation4], %s184
        %s186 = sand.u32 %s96, 1
        %s187 = smul.addr %s186, 8
        %s188 = scalar_lea.vmem [#allocation5], %s187
        %v189 = vld [vmem:[%s166] sm:$0xf]
        %v190 = vld [vmem:[%s166 + $0x4] sm:$0xf]
        %v194 = vunpack.c.l.s4 1983009808
        %v195 = vunpack.c.0.s8 %v194
        %v196 = vlaneseq
        %v197 = vshrl.u32 %v196, 7
        %v198 = vsub.s32 %v195, %v197
        %v199 = vrot.slane %v189, %v198
        %v200 = vcombine.high %v199, %v199
        %v202 = vunpack.c.l.s4 1983009808
        %v203 = vunpack.c.0.s8 %v202
        %v204 = vlaneseq
        %v205 = vshrl.u32 %v204, 7
        %v206 = vsub.s32 %v203, %v205
        %v207 = vrot.slane %v190, %v206
        %v208 = vcombine.high %v207, %v207
        %vm213 = vcmask 1041408
        %v214 = vsel %vm213, %v199, 0.0
        %v215 = vsel %vm213, %v200, 0.0
        %v216 = vadd.f32 %v214, %v215
        %217 = vadd.xlane.f32.xlu0 %v216
        %v218 = vpop.xlane.xlu0 %217
        %v219 = vsel %vm213, %v207, 0.0
        %v220 = vsel %vm213, %v208, 0.0
        %v221 = vadd.f32 %v219, %v220
        %222 = vadd.xlane.f32.xlu0 %v221
        %v223 = vpop.xlane.xlu0 %222
        %v224 = vrcp.pop 256.0
        %v225 = vmul.f32 %v218, %v224
        %v226 = vmul.f32 %v223, %v224
        %v227 = vsel %vm213, %v225, 0.0
        %v228 = vrot.slane %v227, 4
        %v229 = vadd.f32 %v227, %v228
        %v230 = vrot.slane %v229, 2
        %v231 = vadd.f32 %v229, %v230
        %v232 = vrot.slane %v231, 1
        %v233 = vadd.f32 %v231, %v232
        %v234 = vsel %vm213, %v226, 0.0
        %v235 = vrot.slane %v234, 4
        %v236 = vadd.f32 %v234, %v235
        %v237 = vrot.slane %v236, 2
        %v238 = vadd.f32 %v236, %v237
        %v239 = vrot.slane %v238, 1
        %v240 = vadd.f32 %v238, %v239
        %v241 = vrcp.pop 2.0
        %v242 = vmul.f32 %v233, %v241
        %v243 = vmul.f32 %v240, %v241
        %v244 = vsub.f32 %v189, %v242
        %v245 = vsub.f32 %v190, %v243
        %v246 = vmul.f32 %v244, %v244
        %v247 = vmul.f32 %v245, %v245
        %v251 = vunpack.c.l.s4 1983009808
        %v252 = vunpack.c.0.s8 %v251
        %v253 = vlaneseq
        %v254 = vshrl.u32 %v253, 7
        %v255 = vsub.s32 %v252, %v254
        %v256 = vrot.slane %v246, %v255
        %v257 = vcombine.high %v256, %v256
        %v259 = vunpack.c.l.s4 1983009808
        %v260 = vunpack.c.0.s8 %v259
        %v261 = vlaneseq
        %v262 = vshrl.u32 %v261, 7
        %v263 = vsub.s32 %v260, %v262
        %v264 = vrot.slane %v247, %v263
        %v265 = vcombine.high %v264, %v264
        %v270 = vsel %vm213, %v256, 0.0
        %v271 = vsel %vm213, %v257, 0.0
        %v272 = vadd.f32 %v270, %v271
        %273 = vadd.xlane.f32.xlu0 %v272
        %v274 = vpop.xlane.xlu0 %273
        %v275 = vsel %vm213, %v264, 0.0
        %v276 = vsel %vm213, %v265, 0.0
        %v277 = vadd.f32 %v275, %v276
        %278 = vadd.xlane.f32.xlu0 %v277
        %v279 = vpop.xlane.xlu0 %278
        %v280 = vmul.f32 %v274, %v224
        %v281 = vmul.f32 %v279, %v224
        %v282 = vsel %vm213, %v280, 0.0
        %v283 = vrot.slane %v282, 4
        %v284 = vadd.f32 %v282, %v283
        %v285 = vrot.slane %v284, 2
        %v286 = vadd.f32 %v284, %v285
        %v287 = vrot.slane %v286, 1
        %v288 = vadd.f32 %v286, %v287
        %v289 = vsel %vm213, %v281, 0.0
        %v290 = vrot.slane %v289, 4
        %v291 = vadd.f32 %v289, %v290
        %v292 = vrot.slane %v291, 2
        %v293 = vadd.f32 %v291, %v292
        %v294 = vrot.slane %v293, 1
        %v295 = vadd.f32 %v293, %v294
        %v296 = vmul.f32 %v288, %v241
        %v297 = vmul.f32 %v295, %v241
        %v298 = vadd.f32 %v296, 1e-05
        %v299 = vadd.f32 %v297, 1e-05
        %v300 = vrsqrt.pop %v298
        %v301 = vrsqrt.pop %v299
        %v302 = vld [vmem:[%s1] sm:$0x3]
        %v303 = vld [vmem:[%s1 + $0x2] sm:$0x3]
        %v304 = vld [vmem:[%s2] sm:$0x3]
        %v305 = vld [vmem:[%s2 + $0x2] sm:$0x3]
        %v306 = vmul.f32 %v244, %v300
        %v307 = vmul.f32 %v245, %v301
        %309 = vset.pattern.permute.xlu0 0
        %310 = vperm.xlu0 %309, %v302
        %v311 = vpop.permute.xlu0 %310
        %313 = vset.pattern.permute.xlu0 0
        %314 = vperm.xlu0 %313, %v303
        %v315 = vpop.permute.xlu0 %314
        %v317 = vunpack.c.l.s4 269488144
        %v318 = vunpack.c.0.s8 %v317
        %v319 = vlaneseq
        %v320 = vshrl.u32 %v319, 7
        %v321 = vsub.s32 %v318, %v320
        %v322 = vrot.slane %v311, %v321
        %v324 = vunpack.c.l.s4 269488144
        %v325 = vunpack.c.0.s8 %v324
        %v326 = vlaneseq
        %v327 = vshrl.u32 %v326, 7
        %v328 = vsub.s32 %v325, %v327
        %v329 = vrot.slane %v315, %v328
        %v332 = vmul.f32 %v306, %v322
        %v333 = vmul.f32 %v307, %v329
        %335 = vset.pattern.permute.xlu0 0
        %336 = vperm.xlu0 %335, %v304
        %v337 = vpop.permute.xlu0 %336
        %339 = vset.pattern.permute.xlu0 0
        %340 = vperm.xlu0 %339, %v305
        %v341 = vpop.permute.xlu0 %340
        %v343 = vunpack.c.l.s4 269488144
        %v344 = vunpack.c.0.s8 %v343
        %v345 = vlaneseq
        %v346 = vshrl.u32 %v345, 7
        %v347 = vsub.s32 %v344, %v346
        %v348 = vrot.slane %v337, %v347
        %v350 = vunpack.c.l.s4 269488144
        %v351 = vunpack.c.0.s8 %v350
        %v352 = vlaneseq
        %v353 = vshrl.u32 %v352, 7
        %v354 = vsub.s32 %v351, %v353
        %v355 = vrot.slane %v341, %v354
        %v358 = vadd.f32 %v332, %v348
        %v359 = vadd.f32 %v333, %v355
        %360 = vst [vmem:[%s188] sm:$0xf] %v358
        %361 = vst [vmem:[%s188 + $0x4] sm:$0xf] %v359
        %s362 = sand.u32 %s96, 1
        %s363 = scalar_lea.sflag [#allocation4], %s362
        %s364 = sand.u32 %s96, 1
        %s365 = smul.addr %s364, 8
        %s366 = scalar_lea.vmem [#allocation5], %s365
        // Predicated region
        $region37: #{tpu_custom_call.1} parent=31 // pred_check
          %p367 = pneg %p106
        $region38: #{tpu_custom_call.1} parent=31 // pred_check_branch
          %369 = sbr.rel (%p367) target = $region40
        $region39: #{tpu_custom_call.1} parent=31 // pred_region
          %s371 = ssub.s32 128, 128
          %372 = vsyncadd %s363, %s371
          %s373 = smul.addr %s20, 4
          %s374 = smul.addr %s373, 32
          %s375 = scalar_lea.hbm %s3, %s374
          %s376 = sshll.u32 %s366, 4
          %s377 = int_to_ptr.vmem [resolvable:$true] %s376
          %382 = dma.vmem_to_hbm [thread:$0]  %s377, 128, %s375, %s363, 64, 64, 4
        $region40: #{tpu_custom_call.1} parent=31 // pred_fallthru
          _
      $region32: #{tpu_custom_call.1} parent=5 // pred_fallthru
        _
      %p383 = scmp.le.s32.totalorder 2, %s15
      // Predicated region
      $region41: #{tpu_custom_call.1} parent=5 // pred_check
        %p384 = pneg %p383
      $region42: #{tpu_custom_call.1} parent=5 // pred_check_branch
        %386 = sbr.rel (%p384) target = $region44
      $region43: #{tpu_custom_call.1} parent=5 // pred_region
        %s387 = ssub.s32 %s15, 2
        // Predicated region
        $region45: #{tpu_custom_call.1} parent=43 // pred_check
          %p388 = pneg %p112
        $region46: #{tpu_custom_call.1} parent=43 // pred_check_branch
          %390 = sbr.rel (%p388) target = $region48
        $region47: #{tpu_custom_call.1} parent=43 // pred_region
          %s391 = sand.u32 %s97, 1
          %s392 = scalar_lea.sflag [#allocation4], %s391
          %s393 = sand.u32 %s97, 1
          %s394 = smul.addr %s393, 8
          %s395 = scalar_lea.vmem [#allocation5], %s394
          %396 = dma.done %s392, 128
        $region48: #{tpu_custom_call.1} parent=43 // pred_fallthru
          _
      $region44: #{tpu_custom_call.1} parent=5 // pred_fallthru
        _
    $region6: #{tpu_custom_call.1} parent=1 // loop_footer
      %s19 = sadd.s32 1, %s15
    $region7: #{tpu_custom_call.1} parent=1 // loop_footer_branch
      %14 = sbr.rel target = $region3
    $region8: #{tpu_custom_call.1} parent=1 // loop_exit
      _
    %397 = vsyncpa [#allocation3], 1
    %s398 = scalar_lea.sflag [#allocation3], 1
    %399 = vsyncpa %s398, 1
    %400 = vsyncpa [#allocation4], 1
    %s401 = scalar_lea.sflag [#allocation4], 1
    %402 = vsyncpa %s401, 1

</llo_original>
